<compile_context>
chip_gen: v7x
topology: tpu7x:2x2x1
jax: 0.10.0
libtpu: 0.0.40
codegen_flags: <defaults>
</compile_context>

<pallas_src>
import functools

import jax
import jax.numpy as jnp
from jax.experimental import pallas as pl
from jax.experimental.pallas import tpu as pltpu

BN_EPS = 1e-5


def _linear_bn_kernel(x_ref, wt_ref, gamma_ref, beta_ref, o_ref, *, apply_relu: bool):
    """One Dout-tile of fused Linear + training-mode BatchNorm1d + optional ReLU.

    x_ref:      (N, Din)  bf16 activations (full batch, full K — VMEM resident)
    wt_ref:     (Din, tn) bf16 pre-transposed weight tile
    gamma/beta: (1, tn)   f32 BN affine params
    o_ref:      (N, tn)   output tile
    """
    # MXU matmul: bf16 operands, float32 result. Single shot (K is not tiled).
    y = jnp.dot(x_ref[...], wt_ref[...], preferred_element_type=jnp.float32)  # (N, tn) f32

    # Linear bias intentionally omitted: batch-mean subtraction cancels it exactly.
    # Single-pass batch statistics: var = E[y^2] - mean^2 (no `centered` temporary).
    mean = jnp.mean(y, axis=0, keepdims=True)              # (1, tn)
    mean_sq = jnp.mean(y * y, axis=0, keepdims=True)       # (1, tn)
    var = mean_sq - mean * mean

    inv_std = jax.lax.rsqrt(var + BN_EPS)                  # EUP
    scale = gamma_ref[...].astype(jnp.float32) * inv_std   # (1, tn)
    shift = beta_ref[...].astype(jnp.float32) - mean * scale
    y = y * scale + shift                                  # one fused pass over (N, tn)
    if apply_relu:
        y = jnp.maximum(y, 0.0)
    o_ref[...] = y.astype(o_ref.dtype)


def _pick_tn(dout: int, requested: int) -> int:
    """Largest multiple of 128 that divides Dout, <= requested, and (when possible)
    leaves at least 2 blocks on the parallel Dout axis (v7x megacore)."""
    cap = min(requested, dout)
    if dout >= 256:
        cap = min(cap, dout // 2)
    best = None
    t = 128
    while t <= cap:
        if dout % t == 0:
            best = t
        t += 128
    return best if best is not None else dout


def _vmem_limit_bytes(N, din, tn, x_bytes, w_bytes, o_bytes):
    """Size the scoped-VMEM limit from the actual footprint, capped at chip capacity."""
    footprint = (
        2 * N * din * x_bytes        # x (conservatively assume double buffering)
        + 2 * din * tn * w_bytes     # weight tile, double buffered
        + 2 * N * tn * o_bytes       # output tile, double buffered
        + 4 * N * tn * 4             # f32 matmul result + epilogue temporaries headroom
    )
    try:
        cap = pltpu.get_tpu_info().vmem_capacity_bytes     # 64 MiB v7x, 128 MiB v5e/v6e
    except Exception:  # pragma: no cover - interpret mode / unknown chip
        cap = 64 * 1024 * 1024
    hard_cap = int(cap * 0.85)
    if footprint > hard_cap:
        raise ValueError(
            f"fused_linear_bn tile footprint {footprint / 2**20:.1f} MiB exceeds "
            f"{hard_cap / 2**20:.1f} MiB VMEM budget; reduce batch N or tn.")
    limit = int(footprint * 1.25) + (4 << 20)
    return min(max(limit, 32 * 1024 * 1024), hard_cap)


def fused_linear_bn(x, wt, gamma, beta, *, apply_relu,
                    out_dtype=jnp.bfloat16, tn=1024):
    """Fused (bias-free) Linear + training-mode BatchNorm1d + optional ReLU.

    x:  (N, Din)    activations (bf16 preferred)
    wt: (Din, Dout) pre-transposed weight (bf16 preferred)
    gamma, beta: (Dout,) f32
    """
    N, din = x.shape
    dout = wt.shape[1]
    assert gamma.shape == (dout,) and beta.shape == (dout,), \
        "BN params must match the layer's output width"
    tn = _pick_tn(dout, tn)
    assert dout % tn == 0

    vmem_limit = _vmem_limit_bytes(N, din, tn,
                                   x.dtype.itemsize, wt.dtype.itemsize,
                                   jnp.dtype(out_dtype).itemsize)

    kernel = functools.partial(_linear_bn_kernel, apply_relu=apply_relu)
    return pl.pallas_call(
        kernel,
        out_shape=jax.ShapeDtypeStruct((N, dout), out_dtype),
        grid=(dout // tn,),                                  # 1-D, parallel over Dout tiles
        in_specs=[
            pl.BlockSpec((N, din), lambda j: (0, 0)),        # x: fetched once, VMEM resident
            pl.BlockSpec((din, tn), lambda j: (0, j)),       # weight tile
            pl.BlockSpec((1, tn), lambda j: (0, j)),         # gamma
            pl.BlockSpec((1, tn), lambda j: (0, j)),         # beta
        ],
        out_specs=pl.BlockSpec((N, tn), lambda j: (0, j)),
        compiler_params=pltpu.CompilerParams(
            dimension_semantics=("parallel",),
            vmem_limit_bytes=vmem_limit),
    )(x, wt, gamma.reshape(1, dout), beta.reshape(1, dout))


def init_projection_mlp_params(key, in_dim, hidden_dim, out_dim):
    """Mirror torch defaults: Linear W,b ~ U(-1/sqrt(fan_in), +), BN gamma=1 beta=0.

    Weights are pre-transposed to (Din, Dout) and cast to bf16 ONCE here so the
    forward path has no per-call transpose or cast of the weights.
    """
    # Inherited quirk of the original module: layer3 uses BatchNorm1d(hidden_dim)
    # on an out_dim-wide output, which is only consistent when out_dim == hidden_dim.
    assert out_dim == hidden_dim, \
        "projection_MLP's layer3 BatchNorm1d(hidden_dim) requires out_dim == hidden_dim"

    def linear(k, din, dout):
        kw, kb = jax.random.split(k)
        bound = 1.0 / jnp.sqrt(jnp.float32(din))
        w = jax.random.uniform(kw, (dout, din), jnp.float32, -bound, bound)
        b = jax.random.uniform(kb, (dout,), jnp.float32, -bound, bound)
        return w.T.astype(jnp.bfloat16), b     # pre-transposed, bf16

    k1, k2, k3 = jax.random.split(key, 3)
    wt1, b1 = linear(k1, in_dim, hidden_dim)
    wt2, b2 = linear(k2, hidden_dim, hidden_dim)
    wt3, b3 = linear(k3, hidden_dim, out_dim)
    params = {
        "layer1": {"wt": wt1, "b": b1,
                   "gamma": jnp.ones((hidden_dim,), jnp.float32),
                   "beta": jnp.zeros((hidden_dim,), jnp.float32)},
        "layer2": {"wt": wt2, "b": b2,
                   "gamma": jnp.ones((hidden_dim,), jnp.float32),
                   "beta": jnp.zeros((hidden_dim,), jnp.float32)},
        "layer3": {"wt": wt3, "b": b3,
                   "gamma": jnp.ones((hidden_dim,), jnp.float32),
                   "beta": jnp.zeros((hidden_dim,), jnp.float32)},
    }
    return params


def projection_mlp_forward(params, x, num_layers=3, *, tn=1024,
                           final_dtype=jnp.bfloat16):
    """Forward pass of projection_MLP (training-mode BatchNorm, batch statistics)."""
    l1, l2, l3 = params["layer1"], params["layer2"], params["layer3"]
    x = x.astype(jnp.bfloat16)   # bf16 operands for the MXU; matmul/BN math stays f32
    if num_layers == 3:
        x = fused_linear_bn(x, l1["wt"], l1["gamma"], l1["beta"], apply_relu=True, tn=tn)
        x = fused_linear_bn(x, l2["wt"], l2["gamma"], l2["beta"], apply_relu=True, tn=tn)
        x = fused_linear_bn(x, l3["wt"], l3["gamma"], l3["beta"], apply_relu=False,
                            out_dtype=final_dtype, tn=tn)
    elif num_layers == 2:
        x = fused_linear_bn(x, l1["wt"], l1["gamma"], l1["beta"], apply_relu=True, tn=tn)
        x = fused_linear_bn(x, l3["wt"], l3["gamma"], l3["beta"], apply_relu=False,
                            out_dtype=final_dtype, tn=tn)
    else:
        raise Exception
    return x
    # TODO(synk): BatchNorm1d running_mean / running_var buffer updates (a training-time
    # side effect that does not affect this forward output) are not implemented.


def _reference_forward(params, x, num_layers=3):
    """Pure-JAX reference mirroring the kernel's dtype pipeline (bf16 operands,
    f32 math, bf16 inter-layer activations). Includes the Linear bias to show
    that dropping it in the kernel is numerically cancelled by BN."""
    def layer(p, h, relu):
        hb = h.astype(jnp.bfloat16).astype(jnp.float32)
        wt = p["wt"].astype(jnp.float32)
        y = hb @ wt + p["b"]
        mean = jnp.mean(y, axis=0, keepdims=True)
        var = jnp.mean((y - mean) ** 2, axis=0, keepdims=True)
        y = (y - mean) * jax.lax.rsqrt(var + BN_EPS)
        y = y * p["gamma"] + p["beta"]
        return jnp.maximum(y, 0.0) if relu else y

    if num_layers == 3:
        h = layer(params["layer1"], x, True).astype(jnp.bfloat16)
        h = layer(params["layer2"], h, True).astype(jnp.bfloat16)
        return layer(params["layer3"], h, False)
    else:
        h = layer(params["layer1"], x, True).astype(jnp.bfloat16)
        return layer(params["layer3"], h, False)


if __name__ == "__main__":
    # Small shapes consistent with the module (out_dim == hidden_dim as in the
    # original). Dout=256 with the 128-lane minimum tile keeps 2 blocks on the
    # parallel Dout axis, so the grid/megacore path is actually exercised.
    batch, in_dim, hidden_dim, out_dim = 16, 256, 256, 256

    key = jax.random.PRNGKey(0)
    kx, kp = jax.random.split(key)
    x = jax.random.normal(kx, (batch, in_dim), jnp.float32)
    params = init_projection_mlp_params(kp, in_dim, hidden_dim, out_dim)

    out = projection_mlp_forward(params, x, num_layers=3)
    out = jax.block_until_ready(out)

    ref = _reference_forward(params, x, num_layers=3)
    assert out.shape == (batch, out_dim)
    assert out.dtype == jnp.bfloat16
    assert jnp.allclose(out.astype(jnp.float32), ref, atol=3e-2, rtol=3e-2), \
        "mismatch vs JAX reference"

    # Also exercise the 2-layer path and the f32 final-dtype option once.
    out2 = jax.block_until_ready(
        projection_mlp_forward(params, x, num_layers=2, final_dtype=jnp.float32))
    ref2 = _reference_forward(params, x, num_layers=2)
    assert out2.dtype == jnp.float32
    assert jnp.allclose(out2, ref2, atol=2e-2, rtol=2e-2), \
        "mismatch (2-layer) vs JAX reference"

    print("KERNEL_OK")
</pallas_src>

<mosaic_0001>
module attributes {stable_mosaic.version = 11 : i64} {
  func.func @_linear_bn_kernel(%arg0: i32, %arg1: memref<16x256xbf16, #tpu.memory_space<vmem>>, %arg2: memref<256x128xbf16, #tpu.memory_space<vmem>>, %arg3: memref<1x128xf32, #tpu.memory_space<vmem>>, %arg4: memref<1x128xf32, #tpu.memory_space<vmem>>, %arg5: memref<16x128xbf16, #tpu.memory_space<vmem>>) attributes {dimension_semantics = [#tpu.dimension_semantics<parallel>], iteration_bounds = array<i64: 2>, scalar_prefetch = 0 : i64, scratch_operands = 0 : i64, tpu.core_type = #tpu.core_type<tc>, window_params = [{pipeline_mode = #tpu.pipeline_mode<synchronous>, transform_indices = @transform_0, window_bounds = array<i64: 16, 256>}, {transform_indices = @transform_1, window_bounds = array<i64: 256, 128>}, {transform_indices = @transform_2, window_bounds = array<i64: 1, 128>}, {transform_indices = @transform_3, window_bounds = array<i64: 1, 128>}, {transform_indices = @transform_4, window_bounds = array<i64: 16, 128>}]} {
    %c0 = arith.constant 0 : index
    %c0_0 = arith.constant 0 : index
    %0 = vector.load %arg1[%c0, %c0_0] : memref<16x256xbf16, #tpu.memory_space<vmem>>, vector<16x256xbf16>
    %c0_1 = arith.constant 0 : index
    %c0_2 = arith.constant 0 : index
    %1 = vector.load %arg2[%c0_1, %c0_2] : memref<256x128xbf16, #tpu.memory_space<vmem>>, vector<256x128xbf16>
    %cst = arith.constant dense<0.000000e+00> : vector<16x128xf32>
    %2 = tpu.matmul %0, %1, %cst {dimension_numbers = #tpu.dot_dimension_numbers<[1], [0], [0], [1], [0, 0, 1, 1], [], []>} : vector<16x256xbf16>, vector<256x128xbf16>, vector<16x128xf32> -> vector<16x128xf32>
    %cst_3 = arith.constant dense<0.000000e+00> : vector<128xf32>
    %3 = vector.multi_reduction <add>, %2, %cst_3 [0] : vector<16x128xf32> to vector<128xf32>
    %4 = vector.shape_cast %3 : vector<128xf32> to vector<1x128xf32>
    %cst_4 = arith.constant 1.600000e+01 : f32
    %5 = vector.broadcast %cst_4 : f32 to vector<1x128xf32>
    %6 = arith.divf %4, %5 : vector<1x128xf32>
    %7 = arith.mulf %2, %2 : vector<16x128xf32>
    %cst_5 = arith.constant dense<0.000000e+00> : vector<128xf32>
    %8 = vector.multi_reduction <add>, %7, %cst_5 [0] : vector<16x128xf32> to vector<128xf32>
    %9 = vector.shape_cast %8 : vector<128xf32> to vector<1x128xf32>
    %cst_6 = arith.constant 1.600000e+01 : f32
    %10 = vector.broadcast %cst_6 : f32 to vector<1x128xf32>
    %11 = arith.divf %9, %10 : vector<1x128xf32>
    %12 = arith.mulf %6, %6 : vector<1x128xf32>
    %13 = arith.subf %11, %12 : vector<1x128xf32>
    %cst_7 = arith.constant 9.99999974E-6 : f32
    %14 = vector.broadcast %cst_7 : f32 to vector<1x128xf32>
    %15 = arith.addf %13, %14 : vector<1x128xf32>
    %16 = math.rsqrt %15 : vector<1x128xf32>
    %c0_8 = arith.constant 0 : index
    %c0_9 = arith.constant 0 : index
    %17 = vector.load %arg3[%c0_8, %c0_9] : memref<1x128xf32, #tpu.memory_space<vmem>>, vector<1x128xf32>
    %18 = arith.mulf %17, %16 : vector<1x128xf32>
    %c0_10 = arith.constant 0 : index
    %c0_11 = arith.constant 0 : index
    %19 = vector.load %arg4[%c0_10, %c0_11] : memref<1x128xf32, #tpu.memory_space<vmem>>, vector<1x128xf32>
    %20 = arith.mulf %6, %18 : vector<1x128xf32>
    %21 = arith.subf %19, %20 : vector<1x128xf32>
    %22 = vector.broadcast %18 : vector<1x128xf32> to vector<16x128xf32>
    %23 = arith.mulf %2, %22 : vector<16x128xf32>
    %24 = vector.broadcast %21 : vector<1x128xf32> to vector<16x128xf32>
    %25 = arith.addf %23, %24 : vector<16x128xf32>
    %cst_12 = arith.constant 0.000000e+00 : f32
    %26 = vector.broadcast %cst_12 : f32 to vector<16x128xf32>
    %27 = arith.maximumf %25, %26 : vector<16x128xf32>
    %28 = arith.truncf %27 : vector<16x128xf32> to vector<16x128xbf16>
    %c0_13 = arith.constant 0 : index
    %c0_14 = arith.constant 0 : index
    %29 = vector.load %arg5[%c0_13, %c0_14] : memref<16x128xbf16, #tpu.memory_space<vmem>>, vector<16x128xbf16>
    tpu.vector_store %arg5[%c0_13, %c0_14], %28 {strides = array<i32>} : memref<16x128xbf16, #tpu.memory_space<vmem>>, vector<16x128xbf16>,
    return
  }
  func.func @transform_0(%arg0: i32) -> (i32, i32) {
    %c0_i32 = arith.constant 0 : i32
    %c0_i32_0 = arith.constant 0 : i32
    %c0_i32_1 = arith.constant 0 : i32
    return %c0_i32, %c0_i32_0 : i32, i32
  }
  func.func @transform_1(%arg0: i32) -> (i32, i32) {
    %c0_i32 = arith.constant 0 : i32
    %c0_i32_0 = arith.constant 0 : i32
    return %c0_i32, %arg0 : i32, i32
  }
  func.func @transform_2(%arg0: i32) -> (i32, i32) {
    %c0_i32 = arith.constant 0 : i32
    %c0_i32_0 = arith.constant 0 : i32
    return %c0_i32, %arg0 : i32, i32
  }
  func.func @transform_3(%arg0: i32) -> (i32, i32) {
    %c0_i32 = arith.constant 0 : i32
    %c0_i32_0 = arith.constant 0 : i32
    return %c0_i32, %arg0 : i32, i32
  }
  func.func @transform_4(%arg0: i32) -> (i32, i32) {
    %c0_i32 = arith.constant 0 : i32
    %c0_i32_0 = arith.constant 0 : i32
    return %c0_i32, %arg0 : i32, i32
  }
}

</mosaic_0001>

<llo_original>
// kernel: tpu_custom_call.1
$region0: #{tpu_custom_call.1}
  #allocation0 [shape = 'u32[]', space=smem, size = 0x4, offset = 0x4, fixed_abs, tag = 'smem constant byte address 0x4 - core index']
  #allocation1 [shape = 'u32[144,128]{1,0:T(1,128)}', space=vmem, size = 0x12000, scoped, tag = 'internal scratch']
  %s0 = inlined_call_operand.hbm [shape: bf16[16,256], index: 0, kind: input, shape index: {}]
  %s1 = inlined_call_operand.hbm [shape: bf16[256,256], index: 1, kind: input, shape index: {}]
  %s2 = inlined_call_operand.vmem [shape: f32[1,256], index: 2, kind: input, shape index: {}]
  %s3 = inlined_call_operand.vmem [shape: f32[1,256], index: 3, kind: input, shape index: {}]
  %s4 = inlined_call_operand.hbm [shape: bf16[16,256], index: 4, kind: output, shape index: {}]
  %s5 = sld [smem:[#allocation0]]
  $region57: #{tpu_custom_call.1} parent=0
    _
  %s7 = ssub.s32 1, %s5
  %s8 = scalar_select 0, %s7, %s5
  $region1: #{tpu_custom_call.1} parent=0
    #allocation2 [shape = 'u8[8192]{0}', space=vmem, size = 0x2000, scoped, tag = 'input window, operand 0, single buffered']
    #allocation3 [shape = 's32[2]{0}', space=sflag, size = 0x8, scoped, tag = 'scoped memory for tpu_custom_call.1']
    #allocation4 [shape = 's32[2]{0}', space=sflag, size = 0x8, scoped, tag = 'scoped memory for tpu_custom_call.1']
    #allocation5 [shape = 'u8[131072]{0}', space=vmem, size = 0x20000, scoped, tag = 'input window, operand 1']
    #allocation6 [shape = 's32[2]{0}', space=sflag, size = 0x8, scoped, tag = 'scoped memory for tpu_custom_call.1']
    #allocation7 [shape = 'u8[8192]{0}', space=vmem, size = 0x2000, scoped, tag = 'output window, operand 0']
    %9 = vsyncpa [#allocation3], 0
    %10 = vsyncpa [#allocation6], 0
    %s11 = scalar_lea.sflag [#allocation6], 1
    %12 = vsyncpa %s11, 0
    %13 = vsyncpa [#allocation4], 0
    %s14 = scalar_lea.sflag [#allocation4], 1
    %15 = vsyncpa %s14, 0
    loop: start=0, step=1, limit=4
    $region2: #{tpu_custom_call.1} parent=1 // loop_pre_header
      _
    $region3: #{tpu_custom_call.1} parent=1 // loop_header
      %s17 = sphi 0, %s21
      %p18 = scmp.ge.s32.totalorder %s17, 4
      %s25 = sphi 0, %s25
      %s27 = sphi 0, %s25
      %s28 = sphi 0, %s27
      %s42 = sphi 0, %s28
      %s48 = sphi 0, %s50
      %s51 = sphi 0, %s48
      %s52 = sphi 0, %s51
      %s68 = sphi 0, %s52
      %s74 = sphi 0, %s76
      %s77 = sphi 0, %s74
      %s78 = sphi 0, %s77
      %s94 = sphi 0, %s78
      %s100 = sphi 0, %s102
      %s103 = sphi 0, %s100
      %s104 = sphi 0, %s103
      %s120 = sphi 0, %s104
      %s126 = sphi 0, %s128
      %s129 = sphi 0, %s126
      %s130 = sphi 0, %s129
      %s146 = sphi 0, %s130
    $region4: #{tpu_custom_call.1} parent=1 // loop_header_branch
      %20 = sbr.rel (%p18) target = $region8
    $region5: #{tpu_custom_call.1} parent=1 // loop_body
      %s22 = ssub.s32 %s17, 1
      %s23 = ssub.s32 %s17, 2
      %s24 = sadd.s32 %s17, 1
      %s26 = sadd.s32 %s25, 1
      %p29 = scmp.eq.s32.totalorder %s17, 1
      %p30 = scmp.ne.s32.totalorder %s25, %s27
      %p31 = scmp.eq.s32.totalorder %s17, 0
      %p32 = por %p30, %p31
      %p33 = scmp.ne.s32.totalorder %s25, %s27
      %p34 = scmp.eq.s32.totalorder %s22, 1
      %p35 = por %p33, %p34
      %p36 = scmp.ne.s32.totalorder %s27, %s28
      %p37 = scmp.eq.s32.totalorder %s22, 0
      %p38 = por %p36, %p37
      %p39 = scmp.ne.s32.totalorder %s27, %s28
      %p40 = scmp.eq.s32.totalorder %s23, 1
      %p41 = por %p39, %p40
      %p43 = scmp.ne.s32.totalorder %s28, %s42
      %p44 = scmp.eq.s32.totalorder %s23, 0
      %p45 = por %p43, %p44
      %s46 = ssub.s32 %s17, %s24
      %p47 = scmp.eq.s32.totalorder %s46, 0
      %s49 = sadd.s32 %s48, 1
      %s50 = scalar_select %p47, %s48, %s49
      %p53 = pneg %p47
      %p54 = scmp.eq.s32.totalorder %s17, 1
      %p55 = por %p53, %p54
      %p56 = scmp.ne.s32.totalorder %s48, %s51
      %p57 = scmp.eq.s32.totalorder %s17, 0
      %p58 = por %p56, %p57
      %p59 = scmp.ne.s32.totalorder %s48, %s51
      %p60 = scmp.eq.s32.totalorder %s22, 1
      %p61 = por %p59, %p60
      %p62 = scmp.ne.s32.totalorder %s51, %s52
      %p63 = scmp.eq.s32.totalorder %s22, 0
      %p64 = por %p62, %p63
      %p65 = scmp.ne.s32.totalorder %s51, %s52
      %p66 = scmp.eq.s32.totalorder %s23, 1
      %p67 = por %p65, %p66
      %p69 = scmp.ne.s32.totalorder %s52, %s68
      %p70 = scmp.eq.s32.totalorder %s23, 0
      %p71 = por %p69, %p70
      %s72 = ssub.s32 %s17, %s24
      %p73 = scmp.eq.s32.totalorder %s72, 0
      %s75 = sadd.s32 %s74, 1
      %s76 = scalar_select %p73, %s74, %s75
      %p79 = pneg %p73
      %p80 = scmp.eq.s32.totalorder %s17, 1
      %p81 = por %p79, %p80
      %p82 = scmp.ne.s32.totalorder %s74, %s77
      %p83 = scmp.eq.s32.totalorder %s17, 0
      %p84 = por %p82, %p83
      %p85 = scmp.ne.s32.totalorder %s74, %s77
      %p86 = scmp.eq.s32.totalorder %s22, 1
      %p87 = por %p85, %p86
      %p88 = scmp.ne.s32.totalorder %s77, %s78
      %p89 = scmp.eq.s32.totalorder %s22, 0
      %p90 = por %p88, %p89
      %p91 = scmp.ne.s32.totalorder %s77, %s78
      %p92 = scmp.eq.s32.totalorder %s23, 1
      %p93 = por %p91, %p92
      %p95 = scmp.ne.s32.totalorder %s78, %s94
      %p96 = scmp.eq.s32.totalorder %s23, 0
      %p97 = por %p95, %p96
      %s98 = ssub.s32 %s17, %s24
      %p99 = scmp.eq.s32.totalorder %s98, 0
      %s101 = sadd.s32 %s100, 1
      %s102 = scalar_select %p99, %s100, %s101
      %p105 = pneg %p99
      %p106 = scmp.eq.s32.totalorder %s17, 1
      %p107 = por %p105, %p106
      %p108 = scmp.ne.s32.totalorder %s100, %s103
      %p109 = scmp.eq.s32.totalorder %s17, 0
      %p110 = por %p108, %p109
      %p111 = scmp.ne.s32.totalorder %s100, %s103
      %p112 = scmp.eq.s32.totalorder %s22, 1
      %p113 = por %p111, %p112
      %p114 = scmp.ne.s32.totalorder %s103, %s104
      %p115 = scmp.eq.s32.totalorder %s22, 0
      %p116 = por %p114, %p115
      %p117 = scmp.ne.s32.totalorder %s103, %s104
      %p118 = scmp.eq.s32.totalorder %s23, 1
      %p119 = por %p117, %p118
      %p121 = scmp.ne.s32.totalorder %s104, %s120
      %p122 = scmp.eq.s32.totalorder %s23, 0
      %p123 = por %p121, %p122
      %s124 = ssub.s32 %s17, %s24
      %p125 = scmp.eq.s32.totalorder %s124, 0
      %s127 = sadd.s32 %s126, 1
      %s128 = scalar_select %p125, %s126, %s127
      %p131 = pneg %p125
      %p132 = scmp.eq.s32.totalorder %s17, 1
      %p133 = por %p131, %p132
      %p134 = scmp.ne.s32.totalorder %s126, %s129
      %p135 = scmp.eq.s32.totalorder %s17, 0
      %p136 = por %p134, %p135
      %p137 = scmp.ne.s32.totalorder %s126, %s129
      %p138 = scmp.eq.s32.totalorder %s22, 1
      %p139 = por %p137, %p138
      %p140 = scmp.ne.s32.totalorder %s129, %s130
      %p141 = scmp.eq.s32.totalorder %s22, 0
      %p142 = por %p140, %p141
      %p143 = scmp.ne.s32.totalorder %s129, %s130
      %p144 = scmp.eq.s32.totalorder %s23, 1
      %p145 = por %p143, %p144
      %p147 = scmp.ne.s32.totalorder %s130, %s146
      %p148 = scmp.eq.s32.totalorder %s23, 0
      %p149 = por %p147, %p148
      %p150 = scmp.le.s32.totalorder 1, %s17
      %p151 = scmp.lt.s32.totalorder %s17, 3
      %p152 = pnand %p150, %p151
      %p153 = pneg %p152
      // Predicated region
      $region9: #{tpu_custom_call.1} parent=5 // pred_check
        _
      $region10: #{tpu_custom_call.1} parent=5 // pred_check_branch
        %155 = sbr.rel (%p152) target = $region12
      $region11: #{tpu_custom_call.1} parent=5 // pred_region
        %s156 = ssub.s32 %s17, 1
        // Predicated region
        $region13: #{tpu_custom_call.1} parent=11 // pred_check
          %p157 = pneg %p38
        $region14: #{tpu_custom_call.1} parent=11 // pred_check_branch
          %159 = sbr.rel (%p157) target = $region16
        $region15: #{tpu_custom_call.1} parent=11 // pred_region
          %s161 = ssub.s32 256, 256
          %162 = vsyncadd [#allocation3], %s161
          %s163 = sshll.u32 [#allocation2], 4
          %s164 = int_to_ptr.vmem [resolvable:$true] %s163
          %169 = dma.hbm_to_vmem [thread:$0]  %s0, 256, %s164, [#allocation3], 128, 128, 8
        $region16: #{tpu_custom_call.1} parent=11 // pred_fallthru
          _
      $region12: #{tpu_custom_call.1} parent=5 // pred_fallthru
        _
      %p170 = scmp.lt.s32.totalorder %s17, 2
      // Predicated region
      $region17: #{tpu_custom_call.1} parent=5 // pred_check
        %p171 = pneg %p170
      $region18: #{tpu_custom_call.1} parent=5 // pred_check_branch
        %173 = sbr.rel (%p171) target = $region20
      $region19: #{tpu_custom_call.1} parent=5 // pred_region
        // Predicated region
        $region21: #{tpu_custom_call.1} parent=19 // pred_check
          %p174 = pneg %p58
        $region22: #{tpu_custom_call.1} parent=19 // pred_check_branch
          %176 = sbr.rel (%p174) target = $region24
        $region23: #{tpu_custom_call.1} parent=19 // pred_region
          %s177 = sand.u32 %s48, 1
          %s178 = scalar_lea.sflag [#allocation6], %s177
          %s179 = sand.u32 %s48, 1
          %s180 = smul.addr %s179, 128
          %s181 = scalar_lea.vmem [#allocation5], %s180
          %s183 = ssub.s32 2048, 2048
          %184 = vsyncadd %s178, %s183
          %s185 = smul.addr %s17, 64
          %s186 = scalar_lea.hbm %s1, %s185
          %s187 = sshll.u32 %s181, 4
          %s188 = int_to_ptr.vmem [resolvable:$true] %s187
          %193 = dma.hbm_to_vmem [thread:$0]  %s186, 2048, %s188, %s178, 128, 64, 4
        $region24: #{tpu_custom_call.1} parent=19 // pred_fallthru
          _
        // Predicated region
        $region25: #{tpu_custom_call.1} parent=19 // pred_check
          %p194 = pneg %p84
        $region26: #{tpu_custom_call.1} parent=19 // pred_check_branch
          %196 = sbr.rel (%p194) target = $region28
        $region27: #{tpu_custom_call.1} parent=19 // pred_region
          %p197 = scmp.lt.s32.totalorder %s17, 1
          %s198 = scalar_select %p197, %s17, 1
          %s199 = scalar_lea.vmem %s2, %s198
        $region28: #{tpu_custom_call.1} parent=19 // pred_fallthru
          _
        // Predicated region
        $region29: #{tpu_custom_call.1} parent=19 // pred_check
          %p200 = pneg %p110
        $region30: #{tpu_custom_call.1} parent=19 // pred_check_branch
          %202 = sbr.rel (%p200) target = $region32
        $region31: #{tpu_custom_call.1} parent=19 // pred_region
          %p203 = scmp.lt.s32.totalorder %s17, 1
          %s204 = scalar_select %p203, %s17, 1
          %s205 = scalar_lea.vmem %s3, %s204
        $region32: #{tpu_custom_call.1} parent=19 // pred_fallthru
          _
      $region20: #{tpu_custom_call.1} parent=5 // pred_fallthru
        _
      %p206 = scmp.le.s32.totalorder 1, %s17
      %p207 = scmp.lt.s32.totalorder %s17, 3
      %p208 = pnand %p206, %p207
      %p209 = pneg %p208
      // Predicated region
      $region33: #{tpu_custom_call.1} parent=5 // pred_check
        _
      $region34: #{tpu_custom_call.1} parent=5 // pred_check_branch
        %211 = sbr.rel (%p208) target = $region36
      $region35: #{tpu_custom_call.1} parent=5 // pred_region
        %s212 = ssub.s32 %s17, 1
        // Predicated region
        $region37: #{tpu_custom_call.1} parent=35 // pred_check
          %p213 = pneg %p38
        $region38: #{tpu_custom_call.1} parent=35 // pred_check_branch
          %215 = sbr.rel (%p213) target = $region40
        $region39: #{tpu_custom_call.1} parent=35 // pred_region
          %216 = dma.done [#allocation3], 256
        $region40: #{tpu_custom_call.1} parent=35 // pred_fallthru
          _
        %s217 = sand.u32 %s51, 1
        %s218 = scalar_lea.sflag [#allocation6], %s217
        %s219 = sand.u32 %s51, 1
        %s220 = smul.addr %s219, 128
        %s221 = scalar_lea.vmem [#allocation5], %s220
        // Predicated region
        $region41: #{tpu_custom_call.1} parent=35 // pred_check
          %p222 = pneg %p64
        $region42: #{tpu_custom_call.1} parent=35 // pred_check_branch
          %224 = sbr.rel (%p222) target = $region44
        $region43: #{tpu_custom_call.1} parent=35 // pred_region
          %225 = dma.done %s218, 2048
        $region44: #{tpu_custom_call.1} parent=35 // pred_fallthru
          _
        %p226 = pneg %p38
        %p227 = pneg %p35
        %s228 = sand.u32 %s51, 1
        %s229 = scalar_lea.sflag [#allocation6], %s228
        %s230 = sand.u32 %s51, 1
        %s231 = smul.addr %s230, 128
        %s232 = scalar_lea.vmem [#allocation5], %s231
        %p233 = pneg %p64
        %p234 = pneg %p61
        %p235 = scmp.lt.s32.totalorder %s22, 1
        %s236 = scalar_select %p235, %s22, 1
        %s237 = scalar_lea.vmem %s2, %s236
        %p238 = pneg %p90
        %p239 = pneg %p87
        %p240 = scmp.lt.s32.totalorder %s22, 1
        %s241 = scalar_select %p240, %s22, 1
        %s242 = scalar_lea.vmem %s3, %s241
        %p243 = pneg %p116
        %p244 = pneg %p113
        %p245 = pneg %p142
        %p246 = pneg %p139
        %s247 = sand.u32 %s129, 1
        %s248 = scalar_lea.sflag [#allocation4], %s247
        %s249 = sand.u32 %s129, 1
        %s250 = smul.addr %s249, 8
        %s251 = scalar_lea.vmem [#allocation7], %s250
        %p252 = scmp.lt.s32.totalorder %s22, 1
        %s253 = scalar_select %p252, %s22, 1
        %s254 = scalar_lea.vmem %s2, %s253
        %p255 = scmp.lt.s32.totalorder %s22, 1
        %s256 = scalar_select %p255, %s22, 1
        %s257 = scalar_lea.vmem %s3, %s256
        %v259 = vld [vmem:[#allocation2] sm:$0xff]
        %v260 = vld [vmem:[#allocation2 + $0x8] sm:$0xff]
        %v261 = vld [vmem:[%s221] sm:$0xf]
        %v262 = vld [vmem:[%s221 + $0x4] sm:$0xf]
        %v263 = vld [vmem:[%s221 + $0x8] sm:$0xf]
        %v264 = vld [vmem:[%s221 + $0xc] sm:$0xf]
        %v265 = vld [vmem:[%s221 + $0x10] sm:$0xf]
        %v266 = vld [vmem:[%s221 + $0x14] sm:$0xf]
        %v267 = vld [vmem:[%s221 + $0x18] sm:$0xf]
        %v268 = vld [vmem:[%s221 + $0x1c] sm:$0xf]
        %v269 = vld [vmem:[%s221 + $0x20] sm:$0xf]
        %v270 = vld [vmem:[%s221 + $0x24] sm:$0xf]
        %v271 = vld [vmem:[%s221 + $0x28] sm:$0xf]
        %v272 = vld [vmem:[%s221 + $0x2c] sm:$0xf]
        %v273 = vld [vmem:[%s221 + $0x30] sm:$0xf]
        %v274 = vld [vmem:[%s221 + $0x34] sm:$0xf]
        %v275 = vld [vmem:[%s221 + $0x38] sm:$0xf]
        %v276 = vld [vmem:[%s221 + $0x3c] sm:$0xf]
        %v277 = vld [vmem:[%s221 + $0x40] sm:$0xf]
        %v278 = vld [vmem:[%s221 + $0x44] sm:$0xf]
        %v279 = vld [vmem:[%s221 + $0x48] sm:$0xf]
        %v280 = vld [vmem:[%s221 + $0x4c] sm:$0xf]
        %v281 = vld [vmem:[%s221 + $0x50] sm:$0xf]
        %v282 = vld [vmem:[%s221 + $0x54] sm:$0xf]
        %v283 = vld [vmem:[%s221 + $0x58] sm:$0xf]
        %v284 = vld [vmem:[%s221 + $0x5c] sm:$0xf]
        %v285 = vld [vmem:[%s221 + $0x60] sm:$0xf]
        %v286 = vld [vmem:[%s221 + $0x64] sm:$0xf]
        %v287 = vld [vmem:[%s221 + $0x68] sm:$0xf]
        %v288 = vld [vmem:[%s221 + $0x6c] sm:$0xf]
        %v289 = vld [vmem:[%s221 + $0x70] sm:$0xf]
        %v290 = vld [vmem:[%s221 + $0x74] sm:$0xf]
        %v291 = vld [vmem:[%s221 + $0x78] sm:$0xf]
        %v292 = vld [vmem:[%s221 + $0x7c] sm:$0xf]
        %v295 = vunpack.c.l.b16 %v259
        %v296 = vunpack.c.h.b16 %v259
        %v297 = vunpack.c.l.b16 %v260
        %v298 = vunpack.c.h.b16 %v260
        %v299 = vpack.c.b16 %v297, %v295
        %v300 = vpack.c.b16 %v298, %v296
        %v335 = vunpack.c.l.b16 %v261
        %v336 = vunpack.c.l.b16 %v262
        %v337 = vunpack.c.l.b16 %v263
        %v338 = vunpack.c.l.b16 %v264
        %v339 = vunpack.c.l.b16 %v265
        %v340 = vunpack.c.l.b16 %v266
        %v341 = vunpack.c.l.b16 %v267
        %v342 = vunpack.c.l.b16 %v268
        %v343 = vunpack.c.l.b16 %v269
        %v344 = vunpack.c.l.b16 %v270
        %v345 = vunpack.c.l.b16 %v271
        %v346 = vunpack.c.l.b16 %v272
        %v347 = vunpack.c.l.b16 %v273
        %v348 = vunpack.c.l.b16 %v274
        %v349 = vunpack.c.l.b16 %v275
        %v350 = vunpack.c.l.b16 %v276
        %v351 = vunpack.c.l.b16 %v277
        %v352 = vunpack.c.l.b16 %v278
        %v353 = vunpack.c.l.b16 %v279
        %v354 = vunpack.c.l.b16 %v280
        %v355 = vunpack.c.l.b16 %v281
        %v356 = vunpack.c.l.b16 %v282
        %v357 = vunpack.c.l.b16 %v283
        %v358 = vunpack.c.l.b16 %v284
        %v359 = vunpack.c.l.b16 %v285
        %v360 = vunpack.c.l.b16 %v286
        %v361 = vunpack.c.l.b16 %v287
        %v362 = vunpack.c.l.b16 %v288
        %v363 = vunpack.c.l.b16 %v289
        %v364 = vunpack.c.l.b16 %v290
        %v365 = vunpack.c.l.b16 %v291
        %v366 = vunpack.c.l.b16 %v292
        %v367 = vpack.c.b16 %v336, %v335
        %v368 = vpack.c.b16 %v338, %v337
        %v369 = vpack.c.b16 %v340, %v339
        %v370 = vpack.c.b16 %v342, %v341
        %v371 = vpack.c.b16 %v344, %v343
        %v372 = vpack.c.b16 %v346, %v345
        %v373 = vpack.c.b16 %v348, %v347
        %v374 = vpack.c.b16 %v350, %v349
        %v375 = vpack.c.b16 %v352, %v351
        %v376 = vpack.c.b16 %v354, %v353
        %v377 = vpack.c.b16 %v356, %v355
        %v378 = vpack.c.b16 %v358, %v357
        %v379 = vpack.c.b16 %v360, %v359
        %v380 = vpack.c.b16 %v362, %v361
        %v381 = vpack.c.b16 %v364, %v363
        %v382 = vpack.c.b16 %v366, %v365
        %399 = vmatprep.subr.bf16.mxu0 0
        %400 = vmatpush1.bf16.msra.mxu0 %v367
        %401 = vmatprep.subr.bf16.mxu0 0
        %402 = vmatpush1.bf16.msra.mxu0 %v368
        %403 = vmatprep.subr.bf16.mxu0 0
        %404 = vmatpush1.bf16.msra.mxu0 %v369
        %405 = vmatprep.subr.bf16.mxu0 0
        %406 = vmatpush1.bf16.msra.mxu0 %v370
        %407 = vmatprep.subr.bf16.mxu0 0
        %408 = vmatpush1.bf16.msra.mxu0 %v371
        %409 = vmatprep.subr.bf16.mxu0 0
        %410 = vmatpush1.bf16.msra.mxu0 %v372
        %411 = vmatprep.subr.bf16.mxu0 0
        %412 = vmatpush1.bf16.msra.mxu0 %v373
        %413 = vmatprep.subr.bf16.mxu0 0
        %414 = vmatpush1.bf16.msra.mxu0 %v374
        %415 = vmatprep.subr.bf16.mxu0 0
        %416 = vmatpush1.bf16.msra.mxu0 %v375
        %417 = vmatprep.subr.bf16.mxu0 0
        %418 = vmatpush1.bf16.msra.mxu0 %v376
        %419 = vmatprep.subr.bf16.mxu0 0
        %420 = vmatpush1.bf16.msra.mxu0 %v377
        %421 = vmatprep.subr.bf16.mxu0 0
        %422 = vmatpush1.bf16.msra.mxu0 %v378
        %423 = vmatprep.subr.bf16.mxu0 0
        %424 = vmatpush1.bf16.msra.mxu0 %v379
        %425 = vmatprep.subr.bf16.mxu0 0
        %426 = vmatpush1.bf16.msra.mxu0 %v380
        %427 = vmatprep.subr.bf16.mxu0 0
        %428 = vmatpush1.bf16.msra.mxu0 %v381
        %429 = vmatprep.subr.bf16.mxu0 0
        %430 = vmatpush1.bf16.msra.mxu0 %v382
        %431 = vmatprep.mubr.bf16.mxu0 %v300
        %432 = vmatmul.mubr.bf16.gmra.mrb[0].mxu0 %v299
        %v433 = vpop.f32.mrb[0].mxu0
        %v434 = vadd.f32 0.0, %v433
        %v435 = vpop.f32.mrb[0].mxu0
        %v436 = vpop.f32.mrb[0].mxu0
        %v437 = vadd.f32 0.0, %v436
        %v438 = vpop.f32.mrb[0].mxu0
        %439 = vdwg.mxu0
        %v440 = vadd.f32 %v434, %v437
        %v441 = vrot.slane %v440, 4
        %v442 = vadd.f32 %v440, %v441
        %v443 = vrot.slane %v442, 2
        %v444 = vadd.f32 %v442, %v443
        %v445 = vrot.slane %v444, 1
        %v446 = vadd.f32 %v444, %v445
        %v447 = vrcp.pop 16.0
        %v448 = vmul.f32 %v446, %v447
        %v449 = vmul.f32 %v434, %v434
        %v450 = vmul.f32 %v437, %v437
        %v451 = vadd.f32 %v449, %v450
        %v452 = vrot.slane %v451, 4
        %v453 = vadd.f32 %v451, %v452
        %v454 = vrot.slane %v453, 2
        %v455 = vadd.f32 %v453, %v454
        %v456 = vrot.slane %v455, 1
        %v457 = vadd.f32 %v455, %v456
        %v458 = vmul.f32 %v457, %v447
        %v459 = vmul.f32 %v448, %v448
        %v460 = vsub.f32 %v458, %v459
        %v461 = vadd.f32 %v460, 1e-05
        %v462 = vrsqrt.pop %v461
        %v463 = vld [vmem:[%s254] sm:$0x1]
        %v464 = vmul.f32 %v463, %v462
        %v465 = vld [vmem:[%s257] sm:$0x1]
        %v466 = vmul.f32 %v448, %v464
        %v467 = vsub.f32 %v465, %v466
        %v469 = vlaneseq
        %v470 = vshrl.u32 %v469, 7
        %v471 = vsub.s32 0, %v470
        %v472 = vrot.slane %v464, %v471
        %v474 = vmul.f32 %v434, %v472
        %v475 = vmul.f32 %v437, %v472
        %v477 = vlaneseq
        %v478 = vshrl.u32 %v477, 7
        %v479 = vsub.s32 0, %v478
        %v480 = vrot.slane %v467, %v479
        %v482 = vadd.f32 %v474, %v480
        %v483 = vadd.f32 %v475, %v480
        %v484 = vmax.f32 %v482, 0.0
        %v485 = vmax.f32 %v483, 0.0
        %v486 = vpack.c.bf16 %v485, %v484
        %v488 = vunpack.c.l.b16 %v486
        %v489 = vunpack.c.h.b16 %v486
        %v490 = vpack.c.b16 %v488, %v488
        %v491 = vpack.c.b16 %v489, %v489
        %494 = vst [vmem:[%s251] sm:$0xf] %v490
        %495 = vst [vmem:[%s251 + $0x4] sm:$0xf] %v491
        %s496 = sand.u32 %s129, 1
        %s497 = scalar_lea.sflag [#allocation4], %s496
        %s498 = sand.u32 %s129, 1
        %s499 = smul.addr %s498, 8
        %s500 = scalar_lea.vmem [#allocation7], %s499
        // Predicated region
        $region45: #{tpu_custom_call.1} parent=35 // pred_check
          %p501 = pneg %p139
        $region46: #{tpu_custom_call.1} parent=35 // pred_check_branch
          %503 = sbr.rel (%p501) target = $region48
        $region47: #{tpu_custom_call.1} parent=35 // pred_region
          %s505 = ssub.s32 128, 128
          %506 = vsyncadd %s497, %s505
          %s507 = smul.addr %s22, 64
          %s508 = scalar_lea.hbm %s4, %s507
          %s509 = sshll.u32 %s500, 4
          %s510 = int_to_ptr.vmem [resolvable:$true] %s509
          %515 = dma.vmem_to_hbm [thread:$0]  %s510, 128, %s508, %s497, 64, 128, 4
        $region48: #{tpu_custom_call.1} parent=35 // pred_fallthru
          _
      $region36: #{tpu_custom_call.1} parent=5 // pred_fallthru
        _
      %p516 = scmp.le.s32.totalorder 2, %s17
      // Predicated region
      $region49: #{tpu_custom_call.1} parent=5 // pred_check
        %p517 = pneg %p516
      $region50: #{tpu_custom_call.1} parent=5 // pred_check_branch
        %519 = sbr.rel (%p517) target = $region52
      $region51: #{tpu_custom_call.1} parent=5 // pred_region
        %s520 = ssub.s32 %s17, 2
        // Predicated region
        $region53: #{tpu_custom_call.1} parent=51 // pred_check
          %p521 = pneg %p145
        $region54: #{tpu_custom_call.1} parent=51 // pred_check_branch
          %523 = sbr.rel (%p521) target = $region56
        $region55: #{tpu_custom_call.1} parent=51 // pred_region
          %s524 = sand.u32 %s130, 1
          %s525 = scalar_lea.sflag [#allocation4], %s524
          %s526 = sand.u32 %s130, 1
          %s527 = smul.addr %s526, 8
          %s528 = scalar_lea.vmem [#allocation7], %s527
          %529 = dma.done %s525, 128
        $region56: #{tpu_custom_call.1} parent=51 // pred_fallthru
          _
      $region52: #{tpu_custom_call.1} parent=5 // pred_fallthru
        _
    $region6: #{tpu_custom_call.1} parent=1 // loop_footer
      %s21 = sadd.s32 1, %s17
    $region7: #{tpu_custom_call.1} parent=1 // loop_footer_branch
      %16 = sbr.rel target = $region3
    $region8: #{tpu_custom_call.1} parent=1 // loop_exit
      _
    %530 = vsyncpa [#allocation3], 1
    %s531 = scalar_lea.sflag [#allocation3], 1
    %532 = vsyncpa %s531, 1
    %533 = vsyncpa [#allocation6], 1
    %s534 = scalar_lea.sflag [#allocation6], 1
    %535 = vsyncpa %s534, 1
    %536 = vsyncpa [#allocation4], 1
    %s537 = scalar_lea.sflag [#allocation4], 1
    %538 = vsyncpa %s537, 1

</llo_original>
